<compile_context>
chip_gen: v5e
topology: v5e:2x2
jax: 0.10.0
libtpu: 0.0.40
codegen_flags: <defaults>
</compile_context>

<pallas_src>
import functools

import jax
import jax.numpy as jnp
from jax.experimental import pallas as pl
from jax.experimental.pallas import tpu as pltpu


# --------------------------------------------------------------------------- #
# small static helpers
# --------------------------------------------------------------------------- #
def _cdiv(a, b):
    return -(-a // b)


def _round_up(a, b):
    return _cdiv(a, b) * b


def _sublane(dtype):
    # second-minor tiling multiple: 8 for 32-bit, 16 for 16-bit, 32 for 8-bit
    return {4: 8, 2: 16, 1: 32}.get(jnp.dtype(dtype).itemsize, 8)


def _padded_bytes(h, w, dtype):
    """VMEM bytes of an (h, w) slice in its (sublane, 128)-tiled layout."""
    sub = _sublane(dtype)
    return _round_up(h, sub) * _round_up(w, 128) * jnp.dtype(dtype).itemsize


def _vmem_capacity_bytes():
    try:
        info = pltpu.get_tpu_info()
        cap = int(getattr(info, "vmem_capacity_bytes", 0))
        if cap > 0:
            return cap
    except Exception:
        pass
    return 64 << 20          # conservative default (v7x per-TensorCore VMEM)


def _pick_num_image_blocks(nc, pair_img, pair_cap, two_tc):
    """Number of grid steps on the image axis (blocks as equal as possible)."""
    # fewest blocks such that each block's padded in+out pair fits the budget
    g = max(1, _cdiv(nc * pair_img, pair_cap))
    # keep the pipeline / megacore busy: >=2 steps (>=8, even, on 2-TC chips)
    min_steps = 8 if two_tc else 2
    if nc >= min_steps:
        g = max(g, min_steps)
    elif nc >= 2:
        g = max(g, 2)
    if two_tc and g % 2 == 1 and g < nc:
        g += 1
    return min(g, nc)


def _choose_row_tile(Hm, pth, pbh, H_out, per_row_bytes, pair_cap, sub):
    """Row-slab height for the large-frame path, or None if not worthwhile."""
    if Hm < 2 * sub:
        return None
    tr = pair_cap // max(per_row_bytes, 1)
    tr = max(tr, pth, pbh, sub)          # keeps boundary special-casing small
    tr = _round_up(tr, sub)
    tr = min(tr, (Hm // sub) * sub)
    if tr < sub or tr > Hm:
        return None
    nrb = _cdiv(H_out, tr)
    if nrb <= 1:
        return None
    n_special = sum(1 for j in range(nrb)
                    if j * tr < pth or (j + 1) * tr > pth + Hm)
    if n_special > 8:
        return None
    return tr


# --------------------------------------------------------------------------- #
# Path 1: image-blocked kernel (full (H, W) -> (H_out, W_out) per block)
# --------------------------------------------------------------------------- #
def _rep_pad_block_kernel(x_ref, o_ref, *, ct, cl, Hm, Wm, pth, pbh, plw, prw):
    TB = x_ref.shape[0]
    r0, r1 = pth, pth + Hm          # core rows in the output
    c0, c1 = plw, plw + Wm          # core cols in the output
    it, ib = ct, ct + Hm - 1        # first / last kept input row
    il, ir = cl, cl + Wm - 1        # first / last kept input col

    # core copy (per-store ref slices; nothing large is materialised / reused)
    o_ref[:, r0:r1, c0:c1] = x_ref[:, it:it + Hm, il:il + Wm]

    # top / bottom strips over the core columns (replicated edge row)
    if pth > 0:
        o_ref[:, 0:r0, c0:c1] = jnp.broadcast_to(
            x_ref[:, it:it + 1, il:il + Wm], (TB, pth, Wm))
    if pbh > 0:
        o_ref[:, r1:r1 + pbh, c0:c1] = jnp.broadcast_to(
            x_ref[:, ib:ib + 1, il:il + Wm], (TB, pbh, Wm))

    # left / right strips (+ corners), derived from the input -- no o_ref read-back
    def _side(dst_c, ncol, src_c):
        o_ref[:, r0:r1, dst_c:dst_c + ncol] = jnp.broadcast_to(
            x_ref[:, it:it + Hm, src_c:src_c + 1], (TB, Hm, ncol))
        if pth > 0:
            o_ref[:, 0:r0, dst_c:dst_c + ncol] = jnp.broadcast_to(
                x_ref[:, it:it + 1, src_c:src_c + 1], (TB, pth, ncol))
        if pbh > 0:
            o_ref[:, r1:r1 + pbh, dst_c:dst_c + ncol] = jnp.broadcast_to(
                x_ref[:, ib:ib + 1, src_c:src_c + 1], (TB, pbh, ncol))

    if plw > 0:
        _side(0, plw, il)
    if prw > 0:
        _side(c1, prw, ir)


def _pad_image_blocked(xf, dtype, *, H, W, H_out, W_out, ct, cl, Hm, Wm,
                       pth, pbh, plw, prw, tb, vmem_cap):
    NC = xf.shape[0]
    itemsize = jnp.dtype(dtype).itemsize
    in_blk = tb * _padded_bytes(H, W, dtype)
    out_blk = tb * _padded_bytes(H_out, W_out, dtype)
    vmem_limit = min(max(2 * (in_blk + out_blk) + (8 << 20), 32 << 20),
                     int(vmem_cap * 0.9))

    kernel = functools.partial(
        _rep_pad_block_kernel, ct=ct, cl=cl, Hm=Hm, Wm=Wm,
        pth=pth, pbh=pbh, plw=plw, prw=prw)
    cost = pl.CostEstimate(
        flops=0, transcendentals=0,
        bytes_accessed=int(NC * (H * W + H_out * W_out) * itemsize))

    return pl.pallas_call(
        kernel,
        out_shape=jax.ShapeDtypeStruct((NC, H_out, W_out), dtype),
        grid=(_cdiv(NC, tb),),
        in_specs=[pl.BlockSpec((tb, H, W), lambda i: (i, 0, 0))],
        out_specs=pl.BlockSpec((tb, H_out, W_out), lambda i: (i, 0, 0)),
        compiler_params=pltpu.CompilerParams(
            dimension_semantics=("parallel",),
            vmem_limit_bytes=vmem_limit),
        cost_estimate=cost,
    )(xf)


# --------------------------------------------------------------------------- #
# Path 2: row-tiled kernel for large frames (manual input DMA from HBM)
# --------------------------------------------------------------------------- #
def _rep_pad_rowtile_kernel(x_hbm, o_ref, win, sem, *, TB, TR, ct, cl, Hm, Wm,
                            pth, pbh, plw, prw, specials):
    i = pl.program_id(0)
    j = pl.program_id(1)
    c0, c1 = plw, plw + Wm
    il, ir = cl, cl + Wm - 1

    # Fetch the TR input rows this output slab needs.  The slab's first input row
    # is an arbitrary offset (top-pad shift / row crop), so the input stays in HBM
    # and is pulled in manually; only the needed rows are ever read.
    s = jnp.clip(j * TR - pth, 0, Hm - TR)
    cp = pltpu.make_async_copy(
        x_hbm.at[pl.ds(i * TB, TB), pl.ds(ct + s, TR)], win, sem)
    cp.start()
    cp.wait()
    # TODO(synk): double-buffer this input DMA (prefetch slab j+1) so the HBM read
    # fully overlaps the auto-pipelined output write-back.

    def emit(n_top, n_core, n_bot, off0):
        # Static-geometry stores for one slab:
        #   rows [0, n_top)            -> replicated first core row (win row 0)
        #   rows [n_top, n_top+n_core) -> core rows = win rows [off0, off0+n_core)
        #   rows [n_top+n_core, TR)    -> replicated last core row (win row TR-1)
        def band(r0, nrows, src_r0, src_nr):
            rows = win[:, src_r0:src_r0 + src_nr, il:il + Wm]
            if src_nr != nrows:
                rows = jnp.broadcast_to(rows, (TB, nrows, Wm))
            o_ref[:, r0:r0 + nrows, c0:c1] = rows
            if plw > 0:
                o_ref[:, r0:r0 + nrows, 0:plw] = jnp.broadcast_to(
                    win[:, src_r0:src_r0 + src_nr, il:il + 1], (TB, nrows, plw))
            if prw > 0:
                o_ref[:, r0:r0 + nrows, c1:c1 + prw] = jnp.broadcast_to(
                    win[:, src_r0:src_r0 + src_nr, ir:ir + 1], (TB, nrows, prw))

        if n_top > 0:
            band(0, n_top, 0, 1)
        if n_core > 0:
            band(n_top, n_core, off0, n_core)
        if n_bot > 0:
            band(n_top + n_core, n_bot, TR - 1, 1)

    # Interior slabs: all TR rows are core rows, mapped 1:1 to the window.
    is_interior = jnp.logical_and(j * TR >= pth, (j + 1) * TR <= pth + Hm)

    @pl.when(is_interior)
    def _():
        emit(0, TR, 0, 0)

    # Boundary slabs (first / last few): statically enumerated fixed geometry.
    for js, n_top, n_core, n_bot, off0 in specials:
        @pl.when(j == js)
        def _(n_top=n_top, n_core=n_core, n_bot=n_bot, off0=off0):
            emit(n_top, n_core, n_bot, off0)


def _pad_row_tiled(xf, dtype, *, H, W, H_out, W_out, ct, cl, Hm, Wm,
                   pth, pbh, plw, prw, tr, vmem_cap, pair_cap):
    NC = xf.shape[0]
    itemsize = jnp.dtype(dtype).itemsize
    sub = _sublane(dtype)
    nrb = _cdiv(H_out, tr)

    # statically enumerate the boundary slabs and their (top, core, bottom) split
    specials = []
    for js in range(nrb):
        row0 = js * tr
        if row0 >= pth and row0 + tr <= pth + Hm:
            continue                                   # interior slab
        s = min(max(row0 - pth, 0), Hm - tr)
        n_top = min(max(pth - row0, 0), tr)
        g0 = max(row0, pth)
        g1 = min(row0 + tr, pth + Hm)
        n_core = max(g1 - g0, 0)
        n_bot = tr - n_top - n_core
        off0 = (g0 - pth) - s if n_core > 0 else 0
        specials.append((js, n_top, n_core, n_bot, off0))

    # images per block: must divide NC so the manual DMA never runs off the array
    row_pair = (_round_up(tr, sub)
                * (_round_up(W, 128) + 2 * _round_up(W_out, 128)) * itemsize)
    max_tb = max(1, pair_cap // max(row_pair, 1))
    tb = 1
    for d in range(min(NC, max_tb), 0, -1):
        if NC % d == 0:
            tb = d
            break

    win_bytes = tb * _round_up(tr, sub) * _round_up(W, 128) * itemsize
    out_blk = tb * _round_up(tr, sub) * _round_up(W_out, 128) * itemsize
    vmem_limit = min(max(2 * out_blk + win_bytes + (8 << 20), 32 << 20),
                     int(vmem_cap * 0.9))

    kernel = functools.partial(
        _rep_pad_rowtile_kernel, TB=tb, TR=tr, ct=ct, cl=cl, Hm=Hm, Wm=Wm,
        pth=pth, pbh=pbh, plw=plw, prw=prw, specials=tuple(specials))
    cost = pl.CostEstimate(
        flops=0, transcendentals=0,
        bytes_accessed=int(NC * (Hm * W + H_out * W_out) * itemsize))

    return pl.pallas_call(
        kernel,
        out_shape=jax.ShapeDtypeStruct((NC, H_out, W_out), dtype),
        grid=(NC // tb, nrb),
        in_specs=[pl.BlockSpec(memory_space=pl.ANY)],
        out_specs=pl.BlockSpec((tb, tr, W_out), lambda i, j: (i, j, 0)),
        scratch_shapes=[pltpu.VMEM((tb, tr, W), dtype),
                        pltpu.SemaphoreType.DMA(())],
        compiler_params=pltpu.CompilerParams(
            dimension_semantics=("parallel", "arbitrary"),
            vmem_limit_bytes=vmem_limit),
        cost_estimate=cost,
    )(xf)


# --------------------------------------------------------------------------- #
# public wrapper
# --------------------------------------------------------------------------- #
def replication_pad2d_naive(x, padding, detach=False, *,
                            _force_image_block=None, _force_row_tile=None):
    """Pallas equivalent of nunif.modules.replication_pad2d.replication_pad2d_naive."""
    assert x.ndim == 4 and len(padding) == 4
    del detach  # autograd-only in PyTorch; forward semantics are unchanged
    left, right, top, bottom = (int(p) for p in padding)
    plw, prw = max(left, 0), max(right, 0)
    pth, pbh = max(top, 0), max(bottom, 0)
    cl, cr = max(-left, 0), max(-right, 0)
    ct, cb = max(-top, 0), max(-bottom, 0)

    N, C, H, W = x.shape
    Hm, Wm = H - ct - cb, W - cl - cr
    assert Hm > 0 and Wm > 0, "negative padding crops away the whole image"
    H_out, W_out = pth + Hm + pbh, plw + Wm + prw
    NC = N * C
    xf = x.reshape(NC, H, W)
    dtype = x.dtype
    itemsize = jnp.dtype(dtype).itemsize
    sub = _sublane(dtype)

    # TODO(synk): for W_out < 128 every store is a lane-masked vst.msk; a
    # channels-last repack (N*C folded into the minor dim) would make the output
    # slab lane-dense -- not implemented here.

    vmem_cap = _vmem_capacity_bytes()
    # per-step (in + out) budget, measured on the (sublane, 128)-padded layout:
    # ~16 MiB on 64 MiB-VMEM chips (v7x), ~32 MiB on 128 MiB chips (v5e / v6e).
    pair_cap = min(max(vmem_cap // 4, 8 << 20), 32 << 20)
    two_tc = vmem_cap <= (80 << 20)   # small per-core VMEM => v7x-style 2 TCs/chip

    pair_img = _padded_bytes(H, W, dtype) + _padded_bytes(H_out, W_out, dtype)

    tr = _force_row_tile
    if tr is None and _force_image_block is None and pair_img > pair_cap:
        per_row = (_round_up(W, 128) + 2 * _round_up(W_out, 128)) * itemsize
        tr = _choose_row_tile(Hm, pth, pbh, H_out, per_row, pair_cap, sub)

    if tr is not None:
        tr = int(tr)
        assert tr % sub == 0 and sub <= tr <= Hm and tr < H_out, \
            "invalid row tile for the row-tiled path"
        out = _pad_row_tiled(xf, dtype, H=H, W=W, H_out=H_out, W_out=W_out,
                             ct=ct, cl=cl, Hm=Hm, Wm=Wm, pth=pth, pbh=pbh,
                             plw=plw, prw=prw, tr=tr, vmem_cap=vmem_cap,
                             pair_cap=pair_cap)
    else:
        if _force_image_block is not None:
            tb = max(1, min(int(_force_image_block), NC))
        else:
            g = _pick_num_image_blocks(NC, pair_img, pair_cap, two_tc)
            tb = _cdiv(NC, g)
        out = _pad_image_blocked(xf, dtype, H=H, W=W, H_out=H_out, W_out=W_out,
                                 ct=ct, cl=cl, Hm=Hm, Wm=Wm, pth=pth, pbh=pbh,
                                 plw=plw, prw=prw, tb=tb, vmem_cap=vmem_cap)
    return out.reshape(N, C, H_out, W_out)


class ReplicationPad2dNaive:
    """Stateless module mirroring the PyTorch nn.Module (no parameters)."""

    def __init__(self, padding, detach=False):
        assert isinstance(padding, (list, tuple)) and len(padding) == 4
        self.padding = tuple(int(p) for p in padding)
        self.detach = detach

    def __call__(self, x):
        return replication_pad2d_naive(x, self.padding, detach=self.detach)


def _ref_replication_pad2d(x, padding):
    """Pure-JAX reference (clamp-gather), used for validation only."""
    left, right, top, bottom = padding
    H, W = x.shape[2], x.shape[3]
    rows = jnp.clip(jnp.arange(H + top + bottom) - top, 0, H - 1)
    cols = jnp.clip(jnp.arange(W + left + right) - left, 0, W - 1)
    return x[:, :, rows][:, :, :, cols]


if __name__ == "__main__":
    key = jax.random.PRNGKey(0)
    x = jax.random.normal(key, (2, 4, 16, 16), dtype=jnp.float32)

    # 1) positive (replicate) padding on all sides -- image-blocked path
    pad = (2, 3, 1, 2)
    mod = ReplicationPad2dNaive(pad, detach=True)
    y = jax.block_until_ready(mod(x))
    assert y.shape == (2, 4, 19, 21), y.shape
    assert jnp.array_equal(y, _ref_replication_pad2d(x, pad)), "positive padding"

    # 2) mixed padding (negative values crop, as in the PyTorch module)
    pad2 = (-2, 3, 1, -4)
    y2 = jax.block_until_ready(replication_pad2d_naive(x, pad2))
    assert jnp.array_equal(y2, _ref_replication_pad2d(x, pad2)), "mixed padding"

    # 3) uneven image-block split (block count does not divide N*C)
    y3 = jax.block_until_ready(
        replication_pad2d_naive(x, pad, _force_image_block=3))
    assert jnp.array_equal(y3, _ref_replication_pad2d(x, pad)), "partial image block"

    # 4) bfloat16 input
    xb = x.astype(jnp.bfloat16)
    pad4 = (1, 1, 2, 0)
    y4 = jax.block_until_ready(replication_pad2d_naive(xb, pad4))
    assert jnp.array_equal(y4, _ref_replication_pad2d(xb, pad4)), "bf16"

    # 5) row-tiled (large-frame) path, forced at a small shape
    x5 = jax.random.normal(jax.random.PRNGKey(0), (1, 2, 64, 160), jnp.float32)
    pad5 = (3, 2, 4, 5)
    y5 = jax.block_until_ready(
        replication_pad2d_naive(x5, pad5, _force_row_tile=16))
    assert jnp.array_equal(y5, _ref_replication_pad2d(x5, pad5)), "row-tiled"

    # 6) row-tiled path with crops (only the kept rows are read from HBM)
    pad6 = (-8, 4, 6, -10)
    y6 = jax.block_until_ready(
        replication_pad2d_naive(x5, pad6, _force_row_tile=16))
    assert jnp.array_equal(y6, _ref_replication_pad2d(x5, pad6)), "row-tiled crop"

    print("KERNEL_OK")
</pallas_src>

<mosaic_0001>
module attributes {stable_mosaic.version = 11 : i64} {
  func.func @_rep_pad_block_kernel(%arg0: i32, %arg1: memref<1x16x16xf32, #tpu.memory_space<vmem>>, %arg2: memref<1x19x21xf32, #tpu.memory_space<vmem>>) attributes {dimension_semantics = [#tpu.dimension_semantics<parallel>], iteration_bounds = array<i64: 8>, scalar_prefetch = 0 : i64, scratch_operands = 0 : i64, tpu.core_type = #tpu.core_type<tc>, window_params = [{transform_indices = @transform_0, window_bounds = array<i64: 1, 16, 16>}, {transform_indices = @transform_1, window_bounds = array<i64: 1, 19, 21>}]} {
    %c0 = arith.constant 0 : index
    %c0_0 = arith.constant 0 : index
    %c0_1 = arith.constant 0 : index
    %0 = vector.load %arg1[%c0, %c0_0, %c0_1] : memref<1x16x16xf32, #tpu.memory_space<vmem>>, vector<1x16x16xf32>
    %c0_2 = arith.constant 0 : index
    %c1 = arith.constant 1 : index
    %c2 = arith.constant 2 : index
    %1 = vector.load %arg2[%c0_2, %c1, %c2] : memref<1x19x21xf32, #tpu.memory_space<vmem>>, vector<1x16x16xf32>
    tpu.vector_store %arg2[%c0_2, %c1, %c2], %0 {strides = array<i32>} : memref<1x19x21xf32, #tpu.memory_space<vmem>>, vector<1x16x16xf32>,
    %c0_3 = arith.constant 0 : index
    %c0_4 = arith.constant 0 : index
    %c0_5 = arith.constant 0 : index
    %2 = vector.load %arg1[%c0_3, %c0_4, %c0_5] : memref<1x16x16xf32, #tpu.memory_space<vmem>>, vector<1x1x16xf32>
    %c0_6 = arith.constant 0 : index
    %c0_7 = arith.constant 0 : index
    %c2_8 = arith.constant 2 : index
    %3 = vector.load %arg2[%c0_6, %c0_7, %c2_8] : memref<1x19x21xf32, #tpu.memory_space<vmem>>, vector<1x1x16xf32>
    tpu.vector_store %arg2[%c0_6, %c0_7, %c2_8], %2 {strides = array<i32>} : memref<1x19x21xf32, #tpu.memory_space<vmem>>, vector<1x1x16xf32>,
    %c0_9 = arith.constant 0 : index
    %c15 = arith.constant 15 : index
    %c0_10 = arith.constant 0 : index
    %4 = vector.load %arg1[%c0_9, %c15, %c0_10] : memref<1x16x16xf32, #tpu.memory_space<vmem>>, vector<1x1x16xf32>
    %5 = vector.shape_cast %4 : vector<1x1x16xf32> to vector<1x1x16xf32>
    %6 = vector.broadcast %5 : vector<1x1x16xf32> to vector<1x2x16xf32>
    %c0_11 = arith.constant 0 : index
    %c17 = arith.constant 17 : index
    %c2_12 = arith.constant 2 : index
    %7 = vector.load %arg2[%c0_11, %c17, %c2_12] : memref<1x19x21xf32, #tpu.memory_space<vmem>>, vector<1x2x16xf32>
    tpu.vector_store %arg2[%c0_11, %c17, %c2_12], %6 {strides = array<i32>} : memref<1x19x21xf32, #tpu.memory_space<vmem>>, vector<1x2x16xf32>,
    %c0_13 = arith.constant 0 : index
    %c0_14 = arith.constant 0 : index
    %c0_15 = arith.constant 0 : index
    %8 = vector.load %arg1[%c0_13, %c0_14, %c0_15] : memref<1x16x16xf32, #tpu.memory_space<vmem>>, vector<1x16x1xf32>
    %9 = vector.shape_cast %8 : vector<1x16x1xf32> to vector<1x16x1xf32>
    %10 = vector.broadcast %9 : vector<1x16x1xf32> to vector<1x16x2xf32>
    %c0_16 = arith.constant 0 : index
    %c1_17 = arith.constant 1 : index
    %c0_18 = arith.constant 0 : index
    %11 = vector.load %arg2[%c0_16, %c1_17, %c0_18] : memref<1x19x21xf32, #tpu.memory_space<vmem>>, vector<1x16x2xf32>
    tpu.vector_store %arg2[%c0_16, %c1_17, %c0_18], %10 {strides = array<i32>} : memref<1x19x21xf32, #tpu.memory_space<vmem>>, vector<1x16x2xf32>,
    %c0_19 = arith.constant 0 : index
    %c0_20 = arith.constant 0 : index
    %c0_21 = arith.constant 0 : index
    %12 = vector.load %arg1[%c0_19, %c0_20, %c0_21] : memref<1x16x16xf32, #tpu.memory_space<vmem>>, vector<1x1x1xf32>
    %13 = vector.shape_cast %12 : vector<1x1x1xf32> to vector<1x1x1xf32>
    %14 = vector.broadcast %13 : vector<1x1x1xf32> to vector<1x1x2xf32>
    %c0_22 = arith.constant 0 : index
    %c0_23 = arith.constant 0 : index
    %c0_24 = arith.constant 0 : index
    %15 = vector.load %arg2[%c0_22, %c0_23, %c0_24] : memref<1x19x21xf32, #tpu.memory_space<vmem>>, vector<1x1x2xf32>
    tpu.vector_store %arg2[%c0_22, %c0_23, %c0_24], %14 {strides = array<i32>} : memref<1x19x21xf32, #tpu.memory_space<vmem>>, vector<1x1x2xf32>,
    %c0_25 = arith.constant 0 : index
    %c15_26 = arith.constant 15 : index
    %c0_27 = arith.constant 0 : index
    %16 = vector.load %arg1[%c0_25, %c15_26, %c0_27] : memref<1x16x16xf32, #tpu.memory_space<vmem>>, vector<1x1x1xf32>
    %17 = vector.shape_cast %16 : vector<1x1x1xf32> to vector<1x1x1xf32>
    %18 = vector.broadcast %17 : vector<1x1x1xf32> to vector<1x2x2xf32>
    %c0_28 = arith.constant 0 : index
    %c17_29 = arith.constant 17 : index
    %c0_30 = arith.constant 0 : index
    %19 = vector.load %arg2[%c0_28, %c17_29, %c0_30] : memref<1x19x21xf32, #tpu.memory_space<vmem>>, vector<1x2x2xf32>
    tpu.vector_store %arg2[%c0_28, %c17_29, %c0_30], %18 {strides = array<i32>} : memref<1x19x21xf32, #tpu.memory_space<vmem>>, vector<1x2x2xf32>,
    %c0_31 = arith.constant 0 : index
    %c0_32 = arith.constant 0 : index
    %c15_33 = arith.constant 15 : index
    %20 = vector.load %arg1[%c0_31, %c0_32, %c15_33] : memref<1x16x16xf32, #tpu.memory_space<vmem>>, vector<1x16x1xf32>
    %21 = vector.shape_cast %20 : vector<1x16x1xf32> to vector<1x16x1xf32>
    %22 = vector.broadcast %21 : vector<1x16x1xf32> to vector<1x16x3xf32>
    %c0_34 = arith.constant 0 : index
    %c1_35 = arith.constant 1 : index
    %c18 = arith.constant 18 : index
    %23 = vector.load %arg2[%c0_34, %c1_35, %c18] : memref<1x19x21xf32, #tpu.memory_space<vmem>>, vector<1x16x3xf32>
    tpu.vector_store %arg2[%c0_34, %c1_35, %c18], %22 {strides = array<i32>} : memref<1x19x21xf32, #tpu.memory_space<vmem>>, vector<1x16x3xf32>,
    %c0_36 = arith.constant 0 : index
    %c0_37 = arith.constant 0 : index
    %c15_38 = arith.constant 15 : index
    %24 = vector.load %arg1[%c0_36, %c0_37, %c15_38] : memref<1x16x16xf32, #tpu.memory_space<vmem>>, vector<1x1x1xf32>
    %25 = vector.shape_cast %24 : vector<1x1x1xf32> to vector<1x1x1xf32>
    %26 = vector.broadcast %25 : vector<1x1x1xf32> to vector<1x1x3xf32>
    %c0_39 = arith.constant 0 : index
    %c0_40 = arith.constant 0 : index
    %c18_41 = arith.constant 18 : index
    %27 = vector.load %arg2[%c0_39, %c0_40, %c18_41] : memref<1x19x21xf32, #tpu.memory_space<vmem>>, vector<1x1x3xf32>
    tpu.vector_store %arg2[%c0_39, %c0_40, %c18_41], %26 {strides = array<i32>} : memref<1x19x21xf32, #tpu.memory_space<vmem>>, vector<1x1x3xf32>,
    %c0_42 = arith.constant 0 : index
    %c15_43 = arith.constant 15 : index
    %c15_44 = arith.constant 15 : index
    %28 = vector.load %arg1[%c0_42, %c15_43, %c15_44] : memref<1x16x16xf32, #tpu.memory_space<vmem>>, vector<1x1x1xf32>
    %29 = vector.shape_cast %28 : vector<1x1x1xf32> to vector<1x1x1xf32>
    %30 = vector.broadcast %29 : vector<1x1x1xf32> to vector<1x2x3xf32>
    %c0_45 = arith.constant 0 : index
    %c17_46 = arith.constant 17 : index
    %c18_47 = arith.constant 18 : index
    %31 = vector.load %arg2[%c0_45, %c17_46, %c18_47] : memref<1x19x21xf32, #tpu.memory_space<vmem>>, vector<1x2x3xf32>
    tpu.vector_store %arg2[%c0_45, %c17_46, %c18_47], %30 {strides = array<i32>} : memref<1x19x21xf32, #tpu.memory_space<vmem>>, vector<1x2x3xf32>,
    return
  }
  func.func @transform_0(%arg0: i32) -> (i32, i32, i32) {
    %c0_i32 = arith.constant 0 : i32
    %c0_i32_0 = arith.constant 0 : i32
    %c0_i32_1 = arith.constant 0 : i32
    return %arg0, %c0_i32, %c0_i32_0 : i32, i32, i32
  }
  func.func @transform_1(%arg0: i32) -> (i32, i32, i32) {
    %c0_i32 = arith.constant 0 : i32
    %c0_i32_0 = arith.constant 0 : i32
    %c0_i32_1 = arith.constant 0 : i32
    return %arg0, %c0_i32, %c0_i32_0 : i32, i32, i32
  }
}

</mosaic_0001>

<llo_original>
// kernel: tpu_custom_call.1
$region0: #{tpu_custom_call.1}
  #allocation0 [shape = 'u32[]', space=smem, size = 0x4, offset = 0x4, fixed_abs, tag = 'smem constant byte address 0x4 - core index']
  #allocation1 [shape = 'u32[72,128]{1,0:T(1,128)}', space=vmem, size = 0x9000, scoped, tag = 'internal scratch']
  %s0 = inlined_call_operand.hbm [shape: f32[8,16,16], index: 0, kind: input, shape index: {}]
  %s1 = inlined_call_operand.vmem [shape: f32[8,19,21], index: 1, kind: output, shape index: {}]
  %s2 = sld [smem:[#allocation0]]
  $region41: #{tpu_custom_call.1} parent=0
    _
  %s4 = ssub.s32 1, %s2
  %s5 = scalar_select 0, %s4, %s2
  $region1: #{tpu_custom_call.1} parent=0
    #allocation2 [shape = 'u8[16384]{0}', space=vmem, size = 0x4000, scoped, tag = 'input window, operand 0']
    #allocation3 [shape = 's32[2]{0}', space=sflag, size = 0x8, scoped, tag = 'scoped memory for tpu_custom_call.1']
    %6 = vsyncpa [#allocation3], 0
    %s7 = scalar_lea.sflag [#allocation3], 1
    %8 = vsyncpa %s7, 0
    loop: start=0, step=1, limit=10
    $region2: #{tpu_custom_call.1} parent=1 // loop_pre_header
      _
    $region3: #{tpu_custom_call.1} parent=1 // loop_header
      %s10 = sphi 0, %s14
      %p11 = scmp.ge.s32.totalorder %s10, 10
      %s20 = sphi 0, %s22
      %s23 = sphi 0, %s20
      %s24 = sphi 0, %s23
      %s40 = sphi 0, %s24
      %s46 = sphi 0, %s48
      %s49 = sphi 0, %s46
      %s50 = sphi 0, %s49
      %s66 = sphi 0, %s50
    $region4: #{tpu_custom_call.1} parent=1 // loop_header_branch
      %13 = sbr.rel (%p11) target = $region8
    $region5: #{tpu_custom_call.1} parent=1 // loop_body
      %s15 = ssub.s32 %s10, 1
      %s16 = ssub.s32 %s10, 2
      %s17 = sadd.s32 %s10, 1
      %s18 = ssub.s32 %s10, %s17
      %p19 = scmp.eq.s32.totalorder %s18, 0
      %s21 = sadd.s32 %s20, 1
      %s22 = scalar_select %p19, %s20, %s21
      %p25 = pneg %p19
      %p26 = scmp.eq.s32.totalorder %s10, 7
      %p27 = por %p25, %p26
      %p28 = scmp.ne.s32.totalorder %s20, %s23
      %p29 = scmp.eq.s32.totalorder %s10, 0
      %p30 = por %p28, %p29
      %p31 = scmp.ne.s32.totalorder %s20, %s23
      %p32 = scmp.eq.s32.totalorder %s15, 7
      %p33 = por %p31, %p32
      %p34 = scmp.ne.s32.totalorder %s23, %s24
      %p35 = scmp.eq.s32.totalorder %s15, 0
      %p36 = por %p34, %p35
      %p37 = scmp.ne.s32.totalorder %s23, %s24
      %p38 = scmp.eq.s32.totalorder %s16, 7
      %p39 = por %p37, %p38
      %p41 = scmp.ne.s32.totalorder %s24, %s40
      %p42 = scmp.eq.s32.totalorder %s16, 0
      %p43 = por %p41, %p42
      %s44 = ssub.s32 %s10, %s17
      %p45 = scmp.eq.s32.totalorder %s44, 0
      %s47 = sadd.s32 %s46, 1
      %s48 = scalar_select %p45, %s46, %s47
      %p51 = pneg %p45
      %p52 = scmp.eq.s32.totalorder %s10, 7
      %p53 = por %p51, %p52
      %p54 = scmp.ne.s32.totalorder %s46, %s49
      %p55 = scmp.eq.s32.totalorder %s10, 0
      %p56 = por %p54, %p55
      %p57 = scmp.ne.s32.totalorder %s46, %s49
      %p58 = scmp.eq.s32.totalorder %s15, 7
      %p59 = por %p57, %p58
      %p60 = scmp.ne.s32.totalorder %s49, %s50
      %p61 = scmp.eq.s32.totalorder %s15, 0
      %p62 = por %p60, %p61
      %p63 = scmp.ne.s32.totalorder %s49, %s50
      %p64 = scmp.eq.s32.totalorder %s16, 7
      %p65 = por %p63, %p64
      %p67 = scmp.ne.s32.totalorder %s50, %s66
      %p68 = scmp.eq.s32.totalorder %s16, 0
      %p69 = por %p67, %p68
      %p70 = scmp.le.s32.totalorder 1, %s10
      %p71 = scmp.lt.s32.totalorder %s10, 9
      %p72 = pnand %p70, %p71
      %p73 = pneg %p72
      // Predicated region
      $region9: #{tpu_custom_call.1} parent=5 // pred_check
        _
      $region10: #{tpu_custom_call.1} parent=5 // pred_check_branch
        %75 = sbr.rel (%p72) target = $region12
      $region11: #{tpu_custom_call.1} parent=5 // pred_region
        %s76 = ssub.s32 %s10, 1
      $region12: #{tpu_custom_call.1} parent=5 // pred_fallthru
        _
      %p77 = scmp.lt.s32.totalorder %s10, 8
      // Predicated region
      $region13: #{tpu_custom_call.1} parent=5 // pred_check
        %p78 = pneg %p77
      $region14: #{tpu_custom_call.1} parent=5 // pred_check_branch
        %80 = sbr.rel (%p78) target = $region16
      $region15: #{tpu_custom_call.1} parent=5 // pred_region
        // Predicated region
        $region17: #{tpu_custom_call.1} parent=15 // pred_check
          %p81 = pneg %p30
        $region18: #{tpu_custom_call.1} parent=15 // pred_check_branch
          %83 = sbr.rel (%p81) target = $region20
        $region19: #{tpu_custom_call.1} parent=15 // pred_region
          %s84 = sand.u32 %s20, 1
          %s85 = scalar_lea.sflag [#allocation3], %s84
          %s86 = sand.u32 %s20, 1
          %s87 = smul.addr %s86, 16
          %s88 = scalar_lea.vmem [#allocation2], %s87
          %90 = vsyncadd %s85, 0
          %s91 = smul.addr %s10, 2
          %s92 = smul.addr %s91, 8
          %s93 = scalar_lea.hbm %s0, %s92
          %s94 = sshll.u32 %s93, 4
          %s95 = int_to_ptr.hbm [resolvable:$true] %s94
          %s96 = sshll.u32 %s88, 4
          %s97 = int_to_ptr.vmem [resolvable:$true] %s96
          %102 = dma.hbm_to_vmem [thread:$0]  %s95, 256, %s97, %s85, 128, 128, 8
        $region20: #{tpu_custom_call.1} parent=15 // pred_fallthru
          _
      $region16: #{tpu_custom_call.1} parent=5 // pred_fallthru
        _
      %p103 = scmp.le.s32.totalorder 1, %s10
      %p104 = scmp.lt.s32.totalorder %s10, 9
      %p105 = pnand %p103, %p104
      %p106 = pneg %p105
      // Predicated region
      $region21: #{tpu_custom_call.1} parent=5 // pred_check
        _
      $region22: #{tpu_custom_call.1} parent=5 // pred_check_branch
        %108 = sbr.rel (%p105) target = $region24
      $region23: #{tpu_custom_call.1} parent=5 // pred_region
        %s109 = ssub.s32 %s10, 1
        %s110 = sand.u32 %s23, 1
        %s111 = scalar_lea.sflag [#allocation3], %s110
        %s112 = sand.u32 %s23, 1
        %s113 = smul.addr %s112, 16
        %s114 = scalar_lea.vmem [#allocation2], %s113
        // Predicated region
        $region25: #{tpu_custom_call.1} parent=23 // pred_check
          %p115 = pneg %p36
        $region26: #{tpu_custom_call.1} parent=23 // pred_check_branch
          %117 = sbr.rel (%p115) target = $region28
        $region27: #{tpu_custom_call.1} parent=23 // pred_region
          %119 = dma.done %s111, 256
        $region28: #{tpu_custom_call.1} parent=23 // pred_fallthru
          _
        %s120 = sand.u32 %s23, 1
        %s121 = scalar_lea.sflag [#allocation3], %s120
        %s122 = sand.u32 %s23, 1
        %s123 = smul.addr %s122, 16
        %s124 = scalar_lea.vmem [#allocation2], %s123
        %p125 = pneg %p36
        %p126 = pneg %p33
        %p127 = pneg %p62
        %p128 = pneg %p59
        %p129 = scmp.lt.s32.totalorder %s15, 7
        %s130 = scalar_select %p129, %s15, 7
        %s131 = smul.addr %s130, 3
        %s132 = smul.addr %s131, 8
        %s133 = scalar_lea.vmem %s1, %s132
        %p134 = scmp.lt.s32.totalorder %s15, 7
        %s135 = scalar_select %p134, %s15, 7
        %s136 = smul.addr %s135, 3
        %s137 = smul.addr %s136, 8
        %s138 = scalar_lea.vmem %s1, %s137
        %v139 = vld [vmem:[%s114] sm:$0xff]
        %v140 = vld [vmem:[%s114 + $0x8] sm:$0xff]
        %143 = vrot.lane.b32.xlu0 %v139, 2
        %v144 = vpop.permute.xlu0 %143
        %145 = vrot.lane.b32.xlu0 %v140, 2
        %v146 = vpop.permute.xlu0 %145
        %vm149 = vcmask 146448
        %150 = vst.msk [vmem:[%s138 + $0x1] sm:$0xff] %vm149, %v144
        %151 = vst.msk [vmem:[%s138 + $0x9] sm:$0xff] %vm149, %v146
        %v152 = vld [vmem:[%s114] sm:$0x1]
        %154 = vrot.lane.b32.xlu0 %v152, 2
        %v155 = vpop.permute.xlu0 %154
        %vm157 = vcmask 139280
        %158 = vst.msk [vmem:[%s138] sm:$0x1] %vm157, %v155
        %v159 = vld [vmem:[%s114 + $0xf] sm:$0x1]
        %v160 = vperm.slane %v159, 0
        %162 = vrot.lane.b32.xlu0 %v160, 2
        %v163 = vpop.permute.xlu0 %162
        %vm165 = vcmask 140304
        %166 = vst.msk [vmem:[%s138 + $0x11] sm:$0x3] %vm165, %v163
        %v167 = vld [vmem:[%s114] sm:$0xff]
        %v168 = vld [vmem:[%s114 + $0x8] sm:$0xff]
        %170 = vset.pattern.permute.xlu0 0
        %171 = vperm.xlu0 %170, %v167
        %v172 = vpop.permute.xlu0 %171
        %175 = vset.pattern.permute.xlu0 0
        %176 = vperm.xlu0 %175, %v168
        %v177 = vpop.permute.xlu0 %176
        %vm179 = vcmask 15360
        %180 = vst.msk [vmem:[%s138 + $0x1] sm:$0xff] %vm179, %v172
        %181 = vst.msk [vmem:[%s138 + $0x9] sm:$0xff] %vm179, %v177
        %v182 = vld [vmem:[%s114] sm:$0x1]
        %184 = vset.pattern.permute.xlu0 0
        %185 = vperm.xlu0 %184, %v182
        %v186 = vpop.permute.xlu0 %185
        %vm188 = vcmask 8192
        %189 = vst.msk [vmem:[%s138] sm:$0x1] %vm188, %v186
        %v190 = vld [vmem:[%s114 + $0xf] sm:$0x1]
        %s192 = vtos %v190
        %v193 = vstv %s192
        %vm195 = vcmask 9216
        %196 = vst.msk [vmem:[%s138 + $0x11] sm:$0x3] %vm195, %v193
        %v197 = vld [vmem:[%s114] sm:$0xff]
        %v198 = vld [vmem:[%s114 + $0x8] sm:$0xff]
        %200 = vset.pattern.permute.xlu0 15
        %201 = vperm.xlu0 %200, %v197
        %v202 = vpop.permute.xlu0 %201
        %205 = vset.pattern.permute.xlu0 15
        %206 = vperm.xlu0 %205, %v198
        %v207 = vpop.permute.xlu0 %206
        %vm209 = vcmask 171152
        %210 = vst.msk [vmem:[%s138 + $0x1] sm:$0xff] %vm209, %v202
        %211 = vst.msk [vmem:[%s138 + $0x9] sm:$0xff] %vm209, %v207
        %v212 = vld [vmem:[%s114] sm:$0x1]
        %214 = vset.pattern.permute.xlu0 15
        %215 = vperm.xlu0 %214, %v212
        %v216 = vpop.permute.xlu0 %215
        %vm218 = vcmask 163984
        %219 = vst.msk [vmem:[%s138] sm:$0x1] %vm218, %v216
        %v220 = vld [vmem:[%s114 + $0xf] sm:$0x1]
        %222 = vrot.lane.b32.xlu0 %v220, 113
        %v223 = vpop.permute.xlu0 %222
        %s224 = vtos %v223
        %v225 = vstv %s224
        %vm227 = vcmask 165008
        %228 = vst.msk [vmem:[%s138 + $0x11] sm:$0x3] %vm227, %v225
        %p229 = scmp.lt.s32.totalorder %s15, 7
        %s230 = scalar_select %p229, %s15, 7
        %s231 = smul.addr %s230, 3
        %s232 = smul.addr %s231, 8
        %s233 = scalar_lea.vmem %s1, %s232
        // Predicated region
        $region29: #{tpu_custom_call.1} parent=23 // pred_check
          %p234 = pneg %p59
        $region30: #{tpu_custom_call.1} parent=23 // pred_check_branch
          %236 = sbr.rel (%p234) target = $region32
        $region31: #{tpu_custom_call.1} parent=23 // pred_region
          _
        $region32: #{tpu_custom_call.1} parent=23 // pred_fallthru
          _
      $region24: #{tpu_custom_call.1} parent=5 // pred_fallthru
        _
      %p237 = scmp.le.s32.totalorder 2, %s10
      // Predicated region
      $region33: #{tpu_custom_call.1} parent=5 // pred_check
        %p238 = pneg %p237
      $region34: #{tpu_custom_call.1} parent=5 // pred_check_branch
        %240 = sbr.rel (%p238) target = $region36
      $region35: #{tpu_custom_call.1} parent=5 // pred_region
        %s241 = ssub.s32 %s10, 2
        // Predicated region
        $region37: #{tpu_custom_call.1} parent=35 // pred_check
          %p242 = pneg %p65
        $region38: #{tpu_custom_call.1} parent=35 // pred_check_branch
          %244 = sbr.rel (%p242) target = $region40
        $region39: #{tpu_custom_call.1} parent=35 // pred_region
          %p245 = scmp.lt.s32.totalorder %s16, 7
          %s246 = scalar_select %p245, %s16, 7
          %s247 = smul.addr %s246, 3
          %s248 = smul.addr %s247, 8
          %s249 = scalar_lea.vmem %s1, %s248
        $region40: #{tpu_custom_call.1} parent=35 // pred_fallthru
          _
      $region36: #{tpu_custom_call.1} parent=5 // pred_fallthru
        _
    $region6: #{tpu_custom_call.1} parent=1 // loop_footer
      %s14 = sadd.s32 1, %s10
    $region7: #{tpu_custom_call.1} parent=1 // loop_footer_branch
      %9 = sbr.rel target = $region3
    $region8: #{tpu_custom_call.1} parent=1 // loop_exit
      _
    %250 = vsyncpa [#allocation3], 1
    %s251 = scalar_lea.sflag [#allocation3], 1
    %252 = vsyncpa %s251, 1

</llo_original>
